<compile_context>
chip_gen: v6e
topology: v6e:2x2x1
jax: 0.10.0
libtpu: 0.0.40
codegen_flags: <defaults>
</compile_context>

<pallas_src>
import functools

import jax
import jax.numpy as jnp
from jax.experimental import pallas as pl
from jax.experimental.pallas import tpu as pltpu


# ---------------------------------------------------------------------------
# Kernels
# ---------------------------------------------------------------------------

def _compgcn_node_kernel(a_ref, deg_ref, h_tile_ref, h_full_ref, rel_ref,
                         w_cat_ref, out_ref, *, activate):
    """One row-tile of a CompGCN layer.

    a_ref:      (TM, N_pad)      bf16   row tile of A_sum
    deg_ref:    (TM, R_pad)      bf16   row tile of Deg
    h_tile_ref: (TM, D_pad)      bf16   same rows of H (self loop)
    h_full_ref: (N_pad, D_pad)   bf16   full H (resident, contraction operand)
    rel_ref:    (R_pad, D_pad)   bf16   relation embeddings (resident)
    w_cat_ref:  (2*D_pad, Do_pad) bf16  concat([W_rel; W_loop])
    out_ref:    (TM, Do_pad)     bf16
    """
    # neigh = A_sum @ H - Deg @ R   (f32 accumulation on the MXU)
    neigh = jnp.dot(a_ref[...], h_full_ref[...],
                    preferred_element_type=jnp.float32)
    neigh = neigh - jnp.dot(deg_ref[...], rel_ref[...],
                            preferred_element_type=jnp.float32)
    # Fused projection: [neigh ; h_tile] @ [W_rel ; W_loop]  (K = 2*D_pad)
    fused = jnp.concatenate(
        [neigh.astype(h_tile_ref.dtype), h_tile_ref[...]], axis=-1)
    out = jnp.dot(fused, w_cat_ref[...], preferred_element_type=jnp.float32)
    if activate:
        out = jnp.tanh(out)
    out_ref[...] = out.astype(out_ref.dtype)


def _rel_proj_kernel(rel_ref, w_ref, out_ref):
    out_ref[...] = jnp.dot(rel_ref[...], w_ref[...],
                           preferred_element_type=jnp.float32
                           ).astype(out_ref.dtype)


# ---------------------------------------------------------------------------
# Wrappers
# ---------------------------------------------------------------------------

def compgcn_node_layer(a_sum, deg, h, rel, w_cat, *, tm, activate):
    """a_sum: [Np, Np], deg: [Np, Rp], h: [Np, Dp], rel: [Rp, Dp],
    w_cat: [2*Dp, Dop]  -> h_out: [Np, Dop]   (all bf16, padded)."""
    n_pad = a_sum.shape[0]
    r_pad = deg.shape[1]
    d_pad = h.shape[1]
    dout_pad = w_cat.shape[1]
    kernel = functools.partial(_compgcn_node_kernel, activate=activate)

    return pl.pallas_call(
        kernel,
        out_shape=jax.ShapeDtypeStruct((n_pad, dout_pad), h.dtype),
        grid_spec=pltpu.PrefetchScalarGridSpec(
            num_scalar_prefetch=0,
            grid=(n_pad // tm,),
            in_specs=[
                pl.BlockSpec((tm, n_pad), lambda i: (i, 0)),       # A_sum rows
                pl.BlockSpec((tm, r_pad), lambda i: (i, 0)),       # Deg rows
                pl.BlockSpec((tm, d_pad), lambda i: (i, 0)),       # H rows (loop)
                pl.BlockSpec((n_pad, d_pad), lambda i: (0, 0)),    # H (resident)
                pl.BlockSpec((r_pad, d_pad), lambda i: (0, 0)),    # rel (resident)
                pl.BlockSpec((2 * d_pad, dout_pad), lambda i: (0, 0)),  # W_cat
            ],
            out_specs=pl.BlockSpec((tm, dout_pad), lambda i: (i, 0)),
        ),
        compiler_params=pltpu.CompilerParams(
            dimension_semantics=("parallel",),
            vmem_limit_bytes=64 * 1024 * 1024),
    )(a_sum, deg, h, h, rel, w_cat)


def rel_projection(rel, w_r):
    """rel: [Rp, Dp], w_r: [Dp, Dop] -> [Rp, Dop] (whole-array pallas_call)."""
    r_pad = rel.shape[0]
    dout_pad = w_r.shape[1]
    return pl.pallas_call(
        _rel_proj_kernel,
        out_shape=jax.ShapeDtypeStruct((r_pad, dout_pad), rel.dtype),
    )(rel, w_r)


# ---------------------------------------------------------------------------
# Model
# ---------------------------------------------------------------------------

def _round_up(x, m):
    return ((x + m - 1) // m) * m


def _pad2(x, rows, cols):
    return jnp.pad(x, ((0, rows - x.shape[0]), (0, cols - x.shape[1])))


def glorot(key, shape):
    fan_in, fan_out = shape
    limit = (6.0 / (fan_in + fan_out)) ** 0.5
    return jax.random.uniform(key, shape, jnp.float32, -limit, limit)


class CompGCNPallas:
    """JAX/Pallas equivalent of BaseModel (CompGCN variant)."""

    def __init__(self, key, num_nodes, h_dim, out_dim, num_rels,
                 num_hidden_layers=1, compute_dtype=jnp.bfloat16):
        self.num_nodes = num_nodes
        self.h_dim = h_dim
        self.out_dim = out_dim
        self.num_rels = num_rels
        self.num_hidden_layers = num_hidden_layers
        self.compute_dtype = compute_dtype

        keys = jax.random.split(key, 2 + 3 * (num_hidden_layers + 1))
        # build_input_layer: node / relation embeddings
        self.node_emb = glorot(keys[0], (num_nodes, h_dim))
        self.rel_emb = glorot(keys[1], (num_rels, h_dim))

        # build_hidden_layer(s) + build_output_layer
        self.layer_params = []
        ki = 2
        dims = [(h_dim, h_dim)] * num_hidden_layers + [(h_dim, out_dim)]
        for (din, dout) in dims:
            w_rel = glorot(keys[ki], (din, dout)); ki += 1
            w_loop = glorot(keys[ki], (din, dout)); ki += 1
            w_r = glorot(keys[ki], (din, dout)); ki += 1
            self.layer_params.append((w_rel, w_loop, w_r))

    def forward(self, adj):
        num_rels, n, _ = adj.shape
        cdt = self.compute_dtype

        # --- one-time precompute shared by every layer (linearity rewrite) ---
        a_sum = jnp.sum(adj, axis=0)                # [N, N]
        deg = jnp.sum(adj, axis=2).T                # [N, R], Deg[i,k]=sum_j A[k,i,j]

        # --- pad to TPU-friendly geometry, cast MXU operands to bf16 ---
        tm = min(256, _round_up(n, 8))              # row tile
        n_pad = _round_up(n, tm)
        r_pad = _round_up(num_rels, 8)
        d_pad = _round_up(self.h_dim, 128)

        a_sum_p = _pad2(a_sum, n_pad, n_pad).astype(cdt)
        deg_p = _pad2(deg, n_pad, r_pad).astype(cdt)
        h = _pad2(self.node_emb, n_pad, d_pad).astype(cdt)
        r = _pad2(self.rel_emb, r_pad, d_pad).astype(cdt)

        n_layers = len(self.layer_params)
        for idx, (w_rel, w_loop, w_r) in enumerate(self.layer_params):
            din, dout = w_rel.shape
            din_pad = _round_up(din, 128)
            dout_pad = _round_up(dout, 128)
            w_cat = jnp.concatenate(
                [_pad2(w_rel, din_pad, dout_pad),
                 _pad2(w_loop, din_pad, dout_pad)], axis=0).astype(cdt)
            w_r_p = _pad2(w_r, din_pad, dout_pad).astype(cdt)
            activate = idx < n_layers - 1          # hidden: tanh, output: none

            h = compgcn_node_layer(a_sum_p, deg_p, h, r, w_cat,
                                   tm=tm, activate=activate)
            r = rel_projection(r, w_r_p)

        h_out = h[:n, :self.out_dim].astype(jnp.float32)
        r_out = r[:num_rels, :self.out_dim].astype(jnp.float32)
        return h_out, r_out


# ---------------------------------------------------------------------------
# Pure-JAX f32 reference (original per-relation formulation)
# ---------------------------------------------------------------------------

def reference_forward(node_emb, rel_emb, layer_params, adj):
    h = node_emb
    r = rel_emb
    n_layers = len(layer_params)
    for idx, (w_rel, w_loop, w_r) in enumerate(layer_params):
        comp = h[None, :, :] - r[:, None, :]                 # [R, N, D]
        neigh = jnp.einsum('kij,kjd->id', adj, comp)         # sum_k A_k @ (H - r_k)
        out = neigh @ w_rel + h @ w_loop
        if idx < n_layers - 1:
            out = jnp.tanh(out)
        h = out
        r = r @ w_r
    return h, r


def build_normalized_adjacency(key, num_rels, num_nodes):
    """Random dense multi-relational adjacency, destination-normalized
    (plays the role of the `norm` argument in the PyTorch forward)."""
    mask = jax.random.bernoulli(key, p=0.35,
                                shape=(num_rels, num_nodes, num_nodes))
    adj = mask.astype(jnp.float32)
    in_deg = jnp.sum(adj, axis=(0, 2), keepdims=True)        # [1, N, 1]
    in_deg = jnp.maximum(in_deg, 1.0)
    return adj / in_deg


if __name__ == "__main__":
    key = jax.random.PRNGKey(0)
    k_model, k_adj = jax.random.split(key)

    num_nodes = 8
    h_dim = 32
    out_dim = 16
    num_rels = 3
    num_hidden_layers = 1

    model = CompGCNPallas(k_model, num_nodes, h_dim, out_dim, num_rels,
                          num_hidden_layers=num_hidden_layers)
    adj = build_normalized_adjacency(k_adj, num_rels, num_nodes)

    h_out, r_out = model.forward(adj)
    jax.block_until_ready((h_out, r_out))

    assert h_out.shape == (num_nodes, out_dim)
    assert r_out.shape == (num_rels, out_dim)
    assert bool(jnp.all(jnp.isfinite(h_out))) and bool(jnp.all(jnp.isfinite(r_out)))

    # Loose check against the f32 per-relation reference (bf16 compute path).
    h_ref, r_ref = reference_forward(model.node_emb, model.rel_emb,
                                     model.layer_params, adj)
    assert bool(jnp.allclose(h_out, h_ref, atol=5e-2, rtol=5e-2))
    assert bool(jnp.allclose(r_out, r_ref, atol=5e-2, rtol=5e-2))

    print("KERNEL_OK")
</pallas_src>

<mosaic_0001>
module attributes {stable_mosaic.version = 11 : i64} {
  func.func @_compgcn_node_kernel(%arg0: i32, %arg1: memref<8x8xbf16, #tpu.memory_space<vmem>>, %arg2: memref<8x8xbf16, #tpu.memory_space<vmem>>, %arg3: memref<8x128xbf16, #tpu.memory_space<vmem>>, %arg4: memref<8x128xbf16, #tpu.memory_space<vmem>>, %arg5: memref<8x128xbf16, #tpu.memory_space<vmem>>, %arg6: memref<256x128xbf16, #tpu.memory_space<vmem>>, %arg7: memref<8x128xbf16, #tpu.memory_space<vmem>>) attributes {dimension_semantics = [#tpu.dimension_semantics<parallel>], iteration_bounds = array<i64: 1>, scalar_prefetch = 0 : i64, scratch_operands = 0 : i64, tpu.core_type = #tpu.core_type<tc>, window_params = [{transform_indices = @transform_0, window_bounds = array<i64: 8, 8>}, {transform_indices = @transform_1, window_bounds = array<i64: 8, 8>}, {transform_indices = @transform_2, window_bounds = array<i64: 8, 128>}, {pipeline_mode = #tpu.pipeline_mode<synchronous>, transform_indices = @transform_3, window_bounds = array<i64: 8, 128>}, {pipeline_mode = #tpu.pipeline_mode<synchronous>, transform_indices = @transform_4, window_bounds = array<i64: 8, 128>}, {pipeline_mode = #tpu.pipeline_mode<synchronous>, transform_indices = @transform_5, window_bounds = array<i64: 256, 128>}, {transform_indices = @transform_6, window_bounds = array<i64: 8, 128>}]} {
    %c0 = arith.constant 0 : index
    %c0_0 = arith.constant 0 : index
    %0 = vector.load %arg1[%c0, %c0_0] : memref<8x8xbf16, #tpu.memory_space<vmem>>, vector<8x8xbf16>
    %c0_1 = arith.constant 0 : index
    %c0_2 = arith.constant 0 : index
    %1 = vector.load %arg4[%c0_1, %c0_2] : memref<8x128xbf16, #tpu.memory_space<vmem>>, vector<8x128xbf16>
    %cst = arith.constant dense<0.000000e+00> : vector<8x128xf32>
    %2 = tpu.matmul %0, %1, %cst {dimension_numbers = #tpu.dot_dimension_numbers<[1], [0], [0], [1], [0, 0, 1, 1], [], []>} : vector<8x8xbf16>, vector<8x128xbf16>, vector<8x128xf32> -> vector<8x128xf32>
    %c0_3 = arith.constant 0 : index
    %c0_4 = arith.constant 0 : index
    %3 = vector.load %arg2[%c0_3, %c0_4] : memref<8x8xbf16, #tpu.memory_space<vmem>>, vector<8x8xbf16>
    %c0_5 = arith.constant 0 : index
    %c0_6 = arith.constant 0 : index
    %4 = vector.load %arg5[%c0_5, %c0_6] : memref<8x128xbf16, #tpu.memory_space<vmem>>, vector<8x128xbf16>
    %cst_7 = arith.constant dense<0.000000e+00> : vector<8x128xf32>
    %5 = tpu.matmul %3, %4, %cst_7 {dimension_numbers = #tpu.dot_dimension_numbers<[1], [0], [0], [1], [0, 0, 1, 1], [], []>} : vector<8x8xbf16>, vector<8x128xbf16>, vector<8x128xf32> -> vector<8x128xf32>
    %6 = arith.subf %2, %5 : vector<8x128xf32>
    %7 = arith.truncf %6 : vector<8x128xf32> to vector<8x128xbf16>
    %c0_8 = arith.constant 0 : index
    %c0_9 = arith.constant 0 : index
    %8 = vector.load %arg3[%c0_8, %c0_9] : memref<8x128xbf16, #tpu.memory_space<vmem>>, vector<8x128xbf16>
    %9 = tpu.concatenate %7, %8 in 1 : vector<8x128xbf16>, vector<8x128xbf16> -> vector<8x256xbf16>
    %c0_10 = arith.constant 0 : index
    %c0_11 = arith.constant 0 : index
    %10 = vector.load %arg6[%c0_10, %c0_11] : memref<256x128xbf16, #tpu.memory_space<vmem>>, vector<256x128xbf16>
    %cst_12 = arith.constant dense<0.000000e+00> : vector<8x128xf32>
    %11 = tpu.matmul %9, %10, %cst_12 {dimension_numbers = #tpu.dot_dimension_numbers<[1], [0], [0], [1], [0, 0, 1, 1], [], []>} : vector<8x256xbf16>, vector<256x128xbf16>, vector<8x128xf32> -> vector<8x128xf32>
    %12 = math.tanh %11 : vector<8x128xf32>
    %13 = arith.truncf %12 : vector<8x128xf32> to vector<8x128xbf16>
    %c0_13 = arith.constant 0 : index
    %c0_14 = arith.constant 0 : index
    %14 = vector.load %arg7[%c0_13, %c0_14] : memref<8x128xbf16, #tpu.memory_space<vmem>>, vector<8x128xbf16>
    tpu.vector_store %arg7[%c0_13, %c0_14], %13 {strides = array<i32>} : memref<8x128xbf16, #tpu.memory_space<vmem>>, vector<8x128xbf16>,
    return
  }
  func.func @transform_0(%arg0: i32) -> (i32, i32) {
    %c0_i32 = arith.constant 0 : i32
    %c0_i32_0 = arith.constant 0 : i32
    return %arg0, %c0_i32 : i32, i32
  }
  func.func @transform_1(%arg0: i32) -> (i32, i32) {
    %c0_i32 = arith.constant 0 : i32
    %c0_i32_0 = arith.constant 0 : i32
    return %arg0, %c0_i32 : i32, i32
  }
  func.func @transform_2(%arg0: i32) -> (i32, i32) {
    %c0_i32 = arith.constant 0 : i32
    %c0_i32_0 = arith.constant 0 : i32
    return %arg0, %c0_i32 : i32, i32
  }
  func.func @transform_3(%arg0: i32) -> (i32, i32) {
    %c0_i32 = arith.constant 0 : i32
    %c0_i32_0 = arith.constant 0 : i32
    %c0_i32_1 = arith.constant 0 : i32
    return %c0_i32, %c0_i32_0 : i32, i32
  }
  func.func @transform_4(%arg0: i32) -> (i32, i32) {
    %c0_i32 = arith.constant 0 : i32
    %c0_i32_0 = arith.constant 0 : i32
    %c0_i32_1 = arith.constant 0 : i32
    return %c0_i32, %c0_i32_0 : i32, i32
  }
  func.func @transform_5(%arg0: i32) -> (i32, i32) {
    %c0_i32 = arith.constant 0 : i32
    %c0_i32_0 = arith.constant 0 : i32
    %c0_i32_1 = arith.constant 0 : i32
    return %c0_i32, %c0_i32_0 : i32, i32
  }
  func.func @transform_6(%arg0: i32) -> (i32, i32) {
    %c0_i32 = arith.constant 0 : i32
    %c0_i32_0 = arith.constant 0 : i32
    return %arg0, %c0_i32 : i32, i32
  }
}

</mosaic_0001>

<llo_original>
// kernel: tpu_custom_call.1
$region0: #{tpu_custom_call.1}
  #allocation0 [shape = 'u32[]', space=smem, size = 0x4, offset = 0x4, fixed_abs, tag = 'smem constant byte address 0x4 - core index']
  #allocation1 [shape = 'u32[144,128]{1,0:T(1,128)}', space=vmem, size = 0x12000, scoped, tag = 'internal scratch']
  %s0 = inlined_call_operand.hbm [shape: bf16[8,8], index: 0, kind: input, shape index: {}]
  %s1 = inlined_call_operand.hbm [shape: bf16[8,8], index: 1, kind: input, shape index: {}]
  %s2 = inlined_call_operand.hbm [shape: bf16[8,128], index: 2, kind: input, shape index: {}]
  %s3 = inlined_call_operand.vmem [shape: bf16[8,128], index: 3, kind: input, shape index: {}]
  %s4 = inlined_call_operand.hbm [shape: bf16[8,128], index: 4, kind: input, shape index: {}]
  %s5 = inlined_call_operand.hbm [shape: bf16[256,128], index: 5, kind: input, shape index: {}]
  %s6 = inlined_call_operand.hbm [shape: bf16[8,128], index: 6, kind: output, shape index: {}]
  %s7 = sld [smem:[#allocation0]]
  $region54: #{tpu_custom_call.1} parent=0
    _
  %s9 = ssub.s32 1, %s7
  %s10 = scalar_select 0, %s9, %s7
  $region1: #{tpu_custom_call.1} parent=0
    #allocation2 [shape = 'u8[2048]{0}', space=vmem, size = 0x800, scoped, tag = 'input window, operand 0, single buffered']
    #allocation3 [shape = 's32[1]{0}', space=sflag, size = 0x4, scoped, tag = 'scoped memory for tpu_custom_call.1']
    #allocation4 [shape = 's32[1]{0}', space=sflag, size = 0x4, scoped, tag = 'scoped memory for tpu_custom_call.1']
    #allocation5 [shape = 'u8[2048]{0}', space=vmem, size = 0x800, scoped, tag = 'input window, operand 1, single buffered']
    #allocation6 [shape = 's32[1]{0}', space=sflag, size = 0x4, scoped, tag = 'scoped memory for tpu_custom_call.1']
    #allocation7 [shape = 'u8[2048]{0}', space=vmem, size = 0x800, scoped, tag = 'input window, operand 2, single buffered']
    #allocation8 [shape = 'u8[2048]{0}', space=vmem, size = 0x800, scoped, tag = 'input window, operand 4, single buffered']
    #allocation9 [shape = 's32[1]{0}', space=sflag, size = 0x4, scoped, tag = 'scoped memory for tpu_custom_call.1']
    #allocation10 [shape = 'u8[65536]{0}', space=vmem, size = 0x10000, scoped, tag = 'input window, operand 5, single buffered']
    #allocation11 [shape = 'u8[2048]{0}', space=vmem, size = 0x800, scoped, tag = 'output window, operand 0, single buffered']
    %11 = vsyncpa [#allocation3], 0
    %12 = vsyncpa [#allocation6], 0
    %13 = vsyncpa [#allocation9], 0
    %14 = vsyncpa [#allocation4], 0
    // Predicated region
    $region2: #{tpu_custom_call.1} parent=1 // pred_check
      _
    $region3: #{tpu_custom_call.1} parent=1 // pred_check_branch
      %16 = sbr.rel (0) target = $region5
    $region4: #{tpu_custom_call.1} parent=1 // pred_region
      %s18 = ssub.s32 64, 64
      %19 = vsyncadd [#allocation3], %s18
      %s21 = sshll.u32 [#allocation2], 4
      %s22 = int_to_ptr.vmem [resolvable:$true] %s21
      %24 = dma.hbm_to_vmem [thread:$0]  %s0, 64, %s22, [#allocation3]
    $region5: #{tpu_custom_call.1} parent=1 // pred_fallthru
      _
    // Predicated region
    $region6: #{tpu_custom_call.1} parent=1 // pred_check
      _
    $region7: #{tpu_custom_call.1} parent=1 // pred_check_branch
      %26 = sbr.rel (0) target = $region9
    $region8: #{tpu_custom_call.1} parent=1 // pred_region
      %s28 = ssub.s32 64, 64
      %29 = vsyncadd [#allocation6], %s28
      %s31 = sshll.u32 [#allocation5], 4
      %s32 = int_to_ptr.vmem [resolvable:$true] %s31
      %34 = dma.hbm_to_vmem [thread:$0]  %s1, 64, %s32, [#allocation6]
    $region9: #{tpu_custom_call.1} parent=1 // pred_fallthru
      _
    // Predicated region
    $region10: #{tpu_custom_call.1} parent=1 // pred_check
      _
    $region11: #{tpu_custom_call.1} parent=1 // pred_check_branch
      %36 = sbr.rel (0) target = $region13
    $region12: #{tpu_custom_call.1} parent=1 // pred_region
      %s38 = ssub.s32 64, 64
      %39 = vsyncadd [#allocation6], %s38
      %s41 = sshll.u32 [#allocation7], 4
      %s42 = int_to_ptr.vmem [resolvable:$true] %s41
      %44 = dma.hbm_to_vmem [thread:$0]  %s2, 64, %s42, [#allocation6]
    $region13: #{tpu_custom_call.1} parent=1 // pred_fallthru
      _
    // Predicated region
    $region14: #{tpu_custom_call.1} parent=1 // pred_check
      _
    $region15: #{tpu_custom_call.1} parent=1 // pred_check_branch
      %46 = sbr.rel (0) target = $region17
    $region16: #{tpu_custom_call.1} parent=1 // pred_region
      _
    $region17: #{tpu_custom_call.1} parent=1 // pred_fallthru
      _
    // Predicated region
    $region18: #{tpu_custom_call.1} parent=1 // pred_check
      _
    $region19: #{tpu_custom_call.1} parent=1 // pred_check_branch
      %48 = sbr.rel (0) target = $region21
    $region20: #{tpu_custom_call.1} parent=1 // pred_region
      %s50 = ssub.s32 64, 64
      %51 = vsyncadd [#allocation9], %s50
      %s53 = sshll.u32 [#allocation8], 4
      %s54 = int_to_ptr.vmem [resolvable:$true] %s53
      %56 = dma.hbm_to_vmem [thread:$0]  %s4, 64, %s54, [#allocation9]
    $region21: #{tpu_custom_call.1} parent=1 // pred_fallthru
      _
    // Predicated region
    $region22: #{tpu_custom_call.1} parent=1 // pred_check
      _
    $region23: #{tpu_custom_call.1} parent=1 // pred_check_branch
      %58 = sbr.rel (0) target = $region25
    $region24: #{tpu_custom_call.1} parent=1 // pred_region
      %s60 = ssub.s32 2048, 2048
      %61 = vsyncadd [#allocation9], %s60
      %s62 = sshll.u32 [#allocation10], 4
      %s63 = int_to_ptr.vmem [resolvable:$true] %s62
      %68 = dma.hbm_to_vmem [thread:$0]  %s5, 2048, %s63, [#allocation9], 64, 64, 4
    $region25: #{tpu_custom_call.1} parent=1 // pred_fallthru
      _
    // Predicated region
    $region26: #{tpu_custom_call.1} parent=1 // pred_check
      _
    $region27: #{tpu_custom_call.1} parent=1 // pred_check_branch
      %70 = sbr.rel (0) target = $region29
    $region28: #{tpu_custom_call.1} parent=1 // pred_region
      %71 = dma.done [#allocation3], 64
    $region29: #{tpu_custom_call.1} parent=1 // pred_fallthru
      _
    // Predicated region
    $region30: #{tpu_custom_call.1} parent=1 // pred_check
      _
    $region31: #{tpu_custom_call.1} parent=1 // pred_check_branch
      %73 = sbr.rel (0) target = $region33
    $region32: #{tpu_custom_call.1} parent=1 // pred_region
      %74 = dma.done [#allocation6], 64
    $region33: #{tpu_custom_call.1} parent=1 // pred_fallthru
      _
    // Predicated region
    $region34: #{tpu_custom_call.1} parent=1 // pred_check
      _
    $region35: #{tpu_custom_call.1} parent=1 // pred_check_branch
      %76 = sbr.rel (0) target = $region37
    $region36: #{tpu_custom_call.1} parent=1 // pred_region
      %77 = dma.done [#allocation6], 64
    $region37: #{tpu_custom_call.1} parent=1 // pred_fallthru
      _
    // Predicated region
    $region38: #{tpu_custom_call.1} parent=1 // pred_check
      _
    $region39: #{tpu_custom_call.1} parent=1 // pred_check_branch
      %79 = sbr.rel (0) target = $region41
    $region40: #{tpu_custom_call.1} parent=1 // pred_region
      %80 = dma.done [#allocation9], 64
    $region41: #{tpu_custom_call.1} parent=1 // pred_fallthru
      _
    // Predicated region
    $region42: #{tpu_custom_call.1} parent=1 // pred_check
      _
    $region43: #{tpu_custom_call.1} parent=1 // pred_check_branch
      %82 = sbr.rel (0) target = $region45
    $region44: #{tpu_custom_call.1} parent=1 // pred_region
      %83 = dma.done [#allocation9], 2048
    $region45: #{tpu_custom_call.1} parent=1 // pred_fallthru
      _
    %v85 = vld [vmem:[#allocation2] sm:$0xf]
    %v86 = vld [vmem:[%s3] sm:$0xf]
    %vm87 = vcmask 64512
    %v89 = vsel %vm87, %v85, 0
    %vm91 = vcmask 1043456
    %v93 = vsel %vm91, %v86, 0
    %95 = vmatprep.subr.bf16.mxu0 0
    %96 = vmatpush1.bf16.msra.mxu0 0
    %97 = vmatprep.subr.bf16.mxu0 0
    %98 = vmatpush1.bf16.msra.mxu0 0
    %99 = vmatprep.subr.bf16.mxu0 0
    %100 = vmatpush1.bf16.msra.mxu0 0
    %101 = vmatprep.subr.bf16.mxu0 0
    %102 = vmatpush1.bf16.msra.mxu0 0
    %103 = vmatprep.subr.bf16.mxu0 0
    %104 = vmatpush1.bf16.msra.mxu0 0
    %105 = vmatprep.subr.bf16.mxu0 0
    %106 = vmatpush1.bf16.msra.mxu0 0
    %107 = vmatprep.subr.bf16.mxu0 0
    %108 = vmatpush1.bf16.msra.mxu0 0
    %109 = vmatprep.subr.bf16.mxu0 0
    %110 = vmatpush1.bf16.msra.mxu0 %v93
    %111 = vmatprep.subr.bf16.mxu0 0
    %112 = vmatpush2.bf16.msra.mxu0 0
    %113 = vmatprep.subr.bf16.mxu0 0
    %114 = vmatpush2.bf16.msra.mxu0 0
    %115 = vmatprep.subr.bf16.mxu0 0
    %116 = vmatpush2.bf16.msra.mxu0 0
    %117 = vmatprep.subr.bf16.mxu0 0
    %118 = vmatpush2.bf16.msra.mxu0 0
    %119 = vmatprep.subr.bf16.mxu0 0
    %120 = vmatpush2.bf16.msra.mxu0 0
    %121 = vmatprep.subr.bf16.mxu0 0
    %122 = vmatpush2.bf16.msra.mxu0 0
    %123 = vmatprep.subr.bf16.mxu0 0
    %124 = vmatpush2.bf16.msra.mxu0 0
    %125 = vmatprep.subr.bf16.mxu0 0
    %126 = vmatpush2.bf16.msra.mxu0 0
    %127 = vmatprep.mubr.bf16.mxu0 0
    %128 = vmatmul.mubr.bf16.gmra.mxu0 %v89
    %v129 = vpop.f32.mrf.mxu0
    %v130 = vadd.f32 0.0, %v129
    %v131 = vpop.f32.mrf.mxu0
    %v132 = vpop.f32.mrf.mxu0
    %v133 = vpop.f32.mrf.mxu0
    %134 = vdwg.mxu0
    %v135 = vld [vmem:[#allocation5] sm:$0xf]
    %v136 = vld [vmem:[#allocation8] sm:$0xf]
    %v138 = vsel %vm87, %v135, 0
    %v141 = vsel %vm91, %v136, 0
    %143 = vmatprep.subr.bf16.mxu0 0
    %144 = vmatpush1.bf16.msra.mxu0 0
    %145 = vmatprep.subr.bf16.mxu0 0
    %146 = vmatpush1.bf16.msra.mxu0 0
    %147 = vmatprep.subr.bf16.mxu0 0
    %148 = vmatpush1.bf16.msra.mxu0 0
    %149 = vmatprep.subr.bf16.mxu0 0
    %150 = vmatpush1.bf16.msra.mxu0 0
    %151 = vmatprep.subr.bf16.mxu0 0
    %152 = vmatpush1.bf16.msra.mxu0 0
    %153 = vmatprep.subr.bf16.mxu0 0
    %154 = vmatpush1.bf16.msra.mxu0 0
    %155 = vmatprep.subr.bf16.mxu0 0
    %156 = vmatpush1.bf16.msra.mxu0 0
    %157 = vmatprep.subr.bf16.mxu0 0
    %158 = vmatpush1.bf16.msra.mxu0 %v141
    %159 = vmatprep.subr.bf16.mxu0 0
    %160 = vmatpush2.bf16.msra.mxu0 0
    %161 = vmatprep.subr.bf16.mxu0 0
    %162 = vmatpush2.bf16.msra.mxu0 0
    %163 = vmatprep.subr.bf16.mxu0 0
    %164 = vmatpush2.bf16.msra.mxu0 0
    %165 = vmatprep.subr.bf16.mxu0 0
    %166 = vmatpush2.bf16.msra.mxu0 0
    %167 = vmatprep.subr.bf16.mxu0 0
    %168 = vmatpush2.bf16.msra.mxu0 0
    %169 = vmatprep.subr.bf16.mxu0 0
    %170 = vmatpush2.bf16.msra.mxu0 0
    %171 = vmatprep.subr.bf16.mxu0 0
    %172 = vmatpush2.bf16.msra.mxu0 0
    %173 = vmatprep.subr.bf16.mxu0 0
    %174 = vmatpush2.bf16.msra.mxu0 0
    %175 = vmatprep.mubr.bf16.mxu0 0
    %176 = vmatmul.mubr.bf16.gmra.mxu0 %v138
    %v177 = vpop.f32.mrf.mxu0
    %v178 = vadd.f32 0.0, %v177
    %v179 = vpop.f32.mrf.mxu0
    %v180 = vpop.f32.mrf.mxu0
    %v181 = vpop.f32.mrf.mxu0
    %182 = vdwg.mxu0
    %v183 = vsub.f32 %v130, %v178
    %v184 = vpack.c.bf16 %v183, %v183
    %v185 = vld [vmem:[#allocation7] sm:$0xf]
    %v186 = vld [vmem:[#allocation10] sm:$0xf]
    %v187 = vld [vmem:[#allocation10 + $0x4] sm:$0xf]
    %v188 = vld [vmem:[#allocation10 + $0x8] sm:$0xf]
    %v189 = vld [vmem:[#allocation10 + $0xc] sm:$0xf]
    %v190 = vld [vmem:[#allocation10 + $0x10] sm:$0xf]
    %v191 = vld [vmem:[#allocation10 + $0x14] sm:$0xf]
    %v192 = vld [vmem:[#allocation10 + $0x18] sm:$0xf]
    %v193 = vld [vmem:[#allocation10 + $0x1c] sm:$0xf]
    %v194 = vld [vmem:[#allocation10 + $0x20] sm:$0xf]
    %v195 = vld [vmem:[#allocation10 + $0x24] sm:$0xf]
    %v196 = vld [vmem:[#allocation10 + $0x28] sm:$0xf]
    %v197 = vld [vmem:[#allocation10 + $0x2c] sm:$0xf]
    %v198 = vld [vmem:[#allocation10 + $0x30] sm:$0xf]
    %v199 = vld [vmem:[#allocation10 + $0x34] sm:$0xf]
    %v200 = vld [vmem:[#allocation10 + $0x38] sm:$0xf]
    %v201 = vld [vmem:[#allocation10 + $0x3c] sm:$0xf]
    %v202 = vld [vmem:[#allocation10 + $0x40] sm:$0xf]
    %v203 = vld [vmem:[#allocation10 + $0x44] sm:$0xf]
    %v204 = vld [vmem:[#allocation10 + $0x48] sm:$0xf]
    %v205 = vld [vmem:[#allocation10 + $0x4c] sm:$0xf]
    %v206 = vld [vmem:[#allocation10 + $0x50] sm:$0xf]
    %v207 = vld [vmem:[#allocation10 + $0x54] sm:$0xf]
    %v208 = vld [vmem:[#allocation10 + $0x58] sm:$0xf]
    %v209 = vld [vmem:[#allocation10 + $0x5c] sm:$0xf]
    %v210 = vld [vmem:[#allocation10 + $0x60] sm:$0xf]
    %v211 = vld [vmem:[#allocation10 + $0x64] sm:$0xf]
    %v212 = vld [vmem:[#allocation10 + $0x68] sm:$0xf]
    %v213 = vld [vmem:[#allocation10 + $0x6c] sm:$0xf]
    %v214 = vld [vmem:[#allocation10 + $0x70] sm:$0xf]
    %v215 = vld [vmem:[#allocation10 + $0x74] sm:$0xf]
    %v216 = vld [vmem:[#allocation10 + $0x78] sm:$0xf]
    %v217 = vld [vmem:[#allocation10 + $0x7c] sm:$0xf]
    %v250 = vunpack.c.l.b16 %v186
    %v251 = vunpack.c.l.b16 %v187
    %v252 = vunpack.c.l.b16 %v188
    %v253 = vunpack.c.l.b16 %v189
    %v254 = vunpack.c.l.b16 %v190
    %v255 = vunpack.c.l.b16 %v191
    %v256 = vunpack.c.l.b16 %v192
    %v257 = vunpack.c.l.b16 %v193
    %v258 = vunpack.c.l.b16 %v194
    %v259 = vunpack.c.l.b16 %v195
    %v260 = vunpack.c.l.b16 %v196
    %v261 = vunpack.c.l.b16 %v197
    %v262 = vunpack.c.l.b16 %v198
    %v263 = vunpack.c.l.b16 %v199
    %v264 = vunpack.c.l.b16 %v200
    %v265 = vunpack.c.l.b16 %v201
    %v266 = vunpack.c.l.b16 %v202
    %v267 = vunpack.c.l.b16 %v203
    %v268 = vunpack.c.l.b16 %v204
    %v269 = vunpack.c.l.b16 %v205
    %v270 = vunpack.c.l.b16 %v206
    %v271 = vunpack.c.l.b16 %v207
    %v272 = vunpack.c.l.b16 %v208
    %v273 = vunpack.c.l.b16 %v209
    %v274 = vunpack.c.l.b16 %v210
    %v275 = vunpack.c.l.b16 %v211
    %v276 = vunpack.c.l.b16 %v212
    %v277 = vunpack.c.l.b16 %v213
    %v278 = vunpack.c.l.b16 %v214
    %v279 = vunpack.c.l.b16 %v215
    %v280 = vunpack.c.l.b16 %v216
    %v281 = vunpack.c.l.b16 %v217
    %v282 = vpack.c.b16 %v251, %v250
    %v283 = vpack.c.b16 %v253, %v252
    %v284 = vpack.c.b16 %v255, %v254
    %v285 = vpack.c.b16 %v257, %v256
    %v286 = vpack.c.b16 %v259, %v258
    %v287 = vpack.c.b16 %v261, %v260
    %v288 = vpack.c.b16 %v263, %v262
    %v289 = vpack.c.b16 %v265, %v264
    %v290 = vpack.c.b16 %v267, %v266
    %v291 = vpack.c.b16 %v269, %v268
    %v292 = vpack.c.b16 %v271, %v270
    %v293 = vpack.c.b16 %v273, %v272
    %v294 = vpack.c.b16 %v275, %v274
    %v295 = vpack.c.b16 %v277, %v276
    %v296 = vpack.c.b16 %v279, %v278
    %v297 = vpack.c.b16 %v281, %v280
    %314 = vmatprep.subr.bf16.mxu0 0
    %315 = vmatpush1.bf16.msra.mxu0 %v289
    %316 = vmatprep.subr.bf16.mxu0 0
    %317 = vmatpush1.bf16.msra.mxu0 %v288
    %318 = vmatprep.subr.bf16.mxu0 0
    %319 = vmatpush1.bf16.msra.mxu0 %v287
    %320 = vmatprep.subr.bf16.mxu0 0
    %321 = vmatpush1.bf16.msra.mxu0 %v286
    %322 = vmatprep.subr.bf16.mxu0 0
    %323 = vmatpush1.bf16.msra.mxu0 %v285
    %324 = vmatprep.subr.bf16.mxu0 0
    %325 = vmatpush1.bf16.msra.mxu0 %v284
    %326 = vmatprep.subr.bf16.mxu0 0
    %327 = vmatpush1.bf16.msra.mxu0 %v283
    %328 = vmatprep.subr.bf16.mxu0 0
    %329 = vmatpush1.bf16.msra.mxu0 %v282
    %330 = vmatprep.subr.bf16.mxu0 0
    %331 = vmatpush2.bf16.msra.mxu0 %v297
    %332 = vmatprep.subr.bf16.mxu0 0
    %333 = vmatpush2.bf16.msra.mxu0 %v296
    %334 = vmatprep.subr.bf16.mxu0 0
    %335 = vmatpush2.bf16.msra.mxu0 %v295
    %336 = vmatprep.subr.bf16.mxu0 0
    %337 = vmatpush2.bf16.msra.mxu0 %v294
    %338 = vmatprep.subr.bf16.mxu0 0
    %339 = vmatpush2.bf16.msra.mxu0 %v293
    %340 = vmatprep.subr.bf16.mxu0 0
    %341 = vmatpush2.bf16.msra.mxu0 %v292
    %342 = vmatprep.subr.bf16.mxu0 0
    %343 = vmatpush2.bf16.msra.mxu0 %v291
    %344 = vmatprep.subr.bf16.mxu0 0
    %345 = vmatpush2.bf16.msra.mxu0 %v290
    %346 = vmatprep.mubr.bf16.mxu0 %v185
    %347 = vmatmul.mubr.bf16.gmra.mxu0 %v184
    %v348 = vpop.f32.mrf.mxu0
    %v349 = vadd.f32 0.0, %v348
    %v350 = vpop.f32.mrf.mxu0
    %v351 = vpop.f32.mrf.mxu0
    %v352 = vpop.f32.mrf.mxu0
    %353 = vdwg.mxu0
    %v354 = vtanh.pop %v349
    %v355 = vpack.c.bf16 %v354, %v354
    %356 = vst [vmem:[#allocation11] sm:$0xf] %v355
    // Predicated region
    $region46: #{tpu_custom_call.1} parent=1 // pred_check
      _
    $region47: #{tpu_custom_call.1} parent=1 // pred_check_branch
      %358 = sbr.rel (0) target = $region49
    $region48: #{tpu_custom_call.1} parent=1 // pred_region
      %s360 = ssub.s32 64, 64
      %361 = vsyncadd [#allocation4], %s360
      %s363 = sshll.u32 [#allocation11], 4
      %s364 = int_to_ptr.vmem [resolvable:$true] %s363
      %366 = dma.vmem_to_hbm [thread:$0]  %s364, 64, %s6, [#allocation4]
    $region49: #{tpu_custom_call.1} parent=1 // pred_fallthru
      _
    // Predicated region
    $region50: #{tpu_custom_call.1} parent=1 // pred_check
      _
    $region51: #{tpu_custom_call.1} parent=1 // pred_check_branch
      %368 = sbr.rel (0) target = $region53
    $region52: #{tpu_custom_call.1} parent=1 // pred_region
      %369 = dma.done [#allocation4], 64
    $region53: #{tpu_custom_call.1} parent=1 // pred_fallthru
      _
    %370 = vsyncpa [#allocation3], 1
    %371 = vsyncpa [#allocation6], 1
    %372 = vsyncpa [#allocation9], 1
    %373 = vsyncpa [#allocation4], 1

</llo_original>
